<compile_context>
chip_gen: v7x
topology: tpu7x:2x2x1
jax: 0.10.0
libtpu: 0.0.40
codegen_flags: <defaults>
</compile_context>

<pallas_src>
import functools
import math

import jax
import jax.numpy as jnp
from jax import lax
from jax.experimental import pallas as pl
from jax.experimental.pallas import tpu as pltpu

_MIB = 1024 * 1024
_LOG_CLAMP_LO = math.log(1e-8)


def _round_up(x, m):
    return ((x + m - 1) // m) * m


def _cdiv(a, b):
    return -(-a // b)


def _sublane_multiple(dtype):
    # f32 -> 8, bf16/f16 -> 16, int8/fp8 -> 32 (packed sublane layouts).
    return max(8, 32 // jnp.dtype(dtype).itemsize)


def _physical_vmem_bytes():
    """Best-effort physical VMEM per TensorCore; conservative when unknown."""
    candidates = []
    try:
        cap = int(getattr(pltpu.get_tpu_info(), "vmem_capacity_bytes", 0) or 0)
        if cap > 0:
            candidates.append(cap)
    except Exception:
        pass
    try:
        kind = (jax.devices()[0].device_kind or "").lower()
    except Exception:
        kind = ""
    if kind:
        if "v7" in kind or "7x" in kind:
            candidates.append(64 * _MIB)          # v7x: 64 MiB per TC
        elif any(tag in kind for tag in ("v4", "v5", "v6")):
            candidates.append(128 * _MIB)         # v4/v5e/v5p/v6e: 128 MiB
        else:
            candidates.append(16 * _MIB)          # v2/v3 / unknown: be safe
    if not candidates:
        return 16 * _MIB
    return min(candidates)


def _pick_tile_n(n, c, in_dtype, budget_bytes, num_splits_max, cap_rows=None):
    """Largest row-tile whose full VMEM working set fits in budget_bytes."""
    itemsize = jnp.dtype(in_dtype).itemsize
    sub = _sublane_multiple(in_dtype)
    c_pad = _round_up(c, 128)  # VMEM pads the minor (lane) dim to 128
    per_row = (
        2 * c_pad * itemsize          # double-buffered logits tile
        + 2 * 128 * 4                 # double-buffered int32 target column (lane padded)
        + 3 * c_pad * 4               # headroom for in-kernel f32 temporaries (exp pass)
        + num_splits_max * 128 * 4    # per-split f32 accumulator column
    )
    t = budget_bytes // per_row
    if cap_rows is not None:
        t = min(t, cap_rows)
    t = max(sub, (t // sub) * sub)
    return n if n <= t else t


def _gce_kernel(pred_ref, tgt_ref, out_ref, acc_ref, *, r, n_rows, tile_n,
                tiles_per_split):
    s = pl.program_id(0)   # split / TensorCore index ("parallel")
    t = pl.program_id(1)   # row-tile index within split ("arbitrary")

    @pl.when(t == 0)
    def _init():
        acc_ref[s] = jnp.zeros((tile_n, 1), jnp.float32)

    x = pred_ref[...]      # (tile_n, C), input dtype -- no full-tile f32 copy
    tgt = tgt_ref[...]     # (tile_n, 1) int32

    # Fused gather + softmax: single exp pass; true-class numerator selected
    # from the already-exponentiated values via a lane-iota compare.
    col = lax.broadcasted_iota(jnp.int32, x.shape, 1)
    mask = col == tgt

    m = jnp.max(x, axis=1, keepdims=True)                    # input dtype
    e = jnp.exp((x - m).astype(jnp.float32))                 # (tile_n, C) f32
    den = jnp.sum(e, axis=1, keepdims=True)
    num = jnp.sum(jnp.where(mask, e, 0.0), axis=1, keepdims=True)

    # log p_y = log(num) - log(den); clamp both sides <=> p in [1e-8, 1].
    logp = jnp.log(num) - jnp.log(den)
    logp = jnp.clip(logp, _LOG_CLAMP_LO, 0.0)
    p_r = jnp.exp(jnp.float32(r) * logp)                     # (tile_n, 1) = p_y**r

    base = (s * tiles_per_split + t) * tile_n

    @pl.when(base + tile_n <= n_rows)
    def _accumulate_full():
        acc_ref[s] += p_r

    @pl.when(base + tile_n > n_rows)
    def _accumulate_partial():
        rows = base + lax.broadcasted_iota(jnp.int32, (tile_n, 1), 0)
        # Mask AFTER all math: garbage (even NaN) in padded rows is discarded.
        acc_ref[s] += jnp.where(rows < n_rows, p_r, 0.0)

    @pl.when(t == pl.num_programs(1) - 1)
    def _finalize():
        out_ref[0, 0] = jnp.sum(acc_ref[s])


def generalized_cross_entropy(pred, target, *, r, num_classes, max_tile_rows=None):
    """pred: (N, C) float logits; target: (N,) int labels in [0, C)."""
    n, c = pred.shape
    assert c == num_classes
    tgt2d = target.astype(jnp.int32).reshape(n, 1)

    phys_vmem = _physical_vmem_bytes()
    vmem_limit = int(phys_vmem * 0.85)    # raise the scoped limit...
    tile_budget = int(phys_vmem * 0.55)   # ...but size tiles with extra margin

    num_splits_max = 2  # v7x has 2 TensorCores; harmless factorization elsewhere
    tile_n = _pick_tile_n(n, c, pred.dtype, tile_budget, num_splits_max,
                          cap_rows=max_tile_rows)

    total_tiles = _cdiv(n, tile_n)
    num_splits = num_splits_max if total_tiles >= num_splits_max else 1
    tiles_per_split = _cdiv(total_tiles, num_splits)

    def data_map(s, t):
        # Clamp so a ragged split never addresses a fully out-of-bounds block;
        # duplicated blocks are fully row-masked inside the kernel.
        return (jnp.minimum(s * tiles_per_split + t, total_tiles - 1), 0)

    kernel = functools.partial(
        _gce_kernel, r=float(r), n_rows=n, tile_n=tile_n,
        tiles_per_split=tiles_per_split)

    partials = pl.pallas_call(
        kernel,
        grid=(num_splits, tiles_per_split),
        in_specs=[
            pl.BlockSpec((tile_n, c), data_map),
            pl.BlockSpec((tile_n, 1), data_map),
        ],
        out_specs=pl.BlockSpec((1, 1), lambda s, t: (s, 0),
                               memory_space=pltpu.MemorySpace.SMEM),
        out_shape=jax.ShapeDtypeStruct((num_splits, 1), jnp.float32),
        scratch_shapes=[pltpu.VMEM((num_splits, tile_n, 1), jnp.float32)],
        compiler_params=pltpu.CompilerParams(
            dimension_semantics=("parallel", "arbitrary"),
            vmem_limit_bytes=vmem_limit,
        ),
    )(pred, tgt2d)

    # loss = sum_i (1 - p_i^r)/r = (N - sum_i p_i^r) / r
    return (jnp.float32(n) - jnp.sum(partials)) / jnp.float32(r)


def _reference(pred, target, r, num_classes):
    # Pure-JAX mirror of the PyTorch Generalized_Cross_Entropy forward.
    p = jax.nn.softmax(pred.astype(jnp.float32), axis=1)
    p = jnp.clip(p, 1e-8, 1.0)
    oh = jax.nn.one_hot(target, num_classes, dtype=jnp.float32)
    py = jnp.sum(oh * p, axis=1)
    loss = (1.0 - jnp.power(py, r)) / r
    return jnp.sum(loss)


if __name__ == "__main__":
    r = 0.7
    num_classes = 32

    key = jax.random.PRNGKey(0)
    k1, k2, k3, k4 = jax.random.split(key, 4)

    # Case 1: tiny batch, single tile / single split.
    pred1 = jax.random.normal(k1, (8, num_classes), dtype=jnp.float32)
    tgt1 = jax.random.randint(k2, (8,), 0, num_classes, dtype=jnp.int32)
    loss1 = generalized_cross_entropy(pred1, tgt1, r=r, num_classes=num_classes)
    jax.block_until_ready(loss1)
    ref1 = _reference(pred1, tgt1, r, num_classes)
    assert jnp.allclose(loss1, ref1, rtol=1e-5, atol=1e-5), (loss1, ref1)

    # Case 2: forces the multi-tile + dual-split + partial-tail-mask path while
    # staying at a small shape (tile cap only used for testing).
    pred2 = jax.random.normal(k3, (100, num_classes), dtype=jnp.float32)
    tgt2 = jax.random.randint(k4, (100,), 0, num_classes, dtype=jnp.int32)
    loss2 = generalized_cross_entropy(pred2, tgt2, r=r, num_classes=num_classes,
                                      max_tile_rows=32)
    jax.block_until_ready(loss2)
    ref2 = _reference(pred2, tgt2, r, num_classes)
    assert jnp.allclose(loss2, ref2, rtol=1e-5, atol=1e-4), (loss2, ref2)

    print("KERNEL_OK")
</pallas_src>

<mosaic_0001>
module attributes {stable_mosaic.version = 11 : i64} {
  func.func @_gce_kernel(%arg0: i32, %arg1: i32, %arg2: memref<8x32xf32, #tpu.memory_space<vmem>>, %arg3: memref<8x1xi32, #tpu.memory_space<vmem>>, %arg4: memref<1x1xf32, #tpu.memory_space<smem>>, %arg5: memref<1x8x1xf32, #tpu.memory_space<vmem>>) attributes {dimension_semantics = [#tpu.dimension_semantics<parallel>, #tpu.dimension_semantics<arbitrary>], iteration_bounds = array<i64: 1, 1>, scalar_prefetch = 0 : i64, scratch_operands = 1 : i64, tpu.core_type = #tpu.core_type<tc>, window_params = [{transform_indices = @transform_0, window_bounds = array<i64: 8, 32>}, {transform_indices = @transform_1, window_bounds = array<i64: 8, 1>}, {transform_indices = @transform_2, window_bounds = array<i64: 1, 1>}]} {
    %c0_i32 = arith.constant 0 : i32
    %0 = arith.cmpi eq, %arg1, %c0_i32 : i32
    %1 = arith.extui %0 : i1 to i32
    %c0_i32_0 = arith.constant 0 : i32
    %2 = arith.cmpi ne, %1, %c0_i32_0 : i32
    scf.if %2 {
      %cst_18 = arith.constant 0.000000e+00 : f32
      %43 = vector.broadcast %cst_18 : f32 to vector<8x1xf32>
      %44 = arith.index_cast %arg0 : i32 to index
      %c0_19 = arith.constant 0 : index
      %c0_20 = arith.constant 0 : index
      %45 = vector.load %arg5[%44, %c0_19, %c0_20] : memref<1x8x1xf32, #tpu.memory_space<vmem>>, vector<1x8x1xf32>
      %46 = vector.shape_cast %45 : vector<1x8x1xf32> to vector<8x1xf32>
      %47 = vector.shape_cast %43 : vector<8x1xf32> to vector<1x8x1xf32>
      tpu.vector_store %arg5[%44, %c0_19, %c0_20], %47 {strides = array<i32>} : memref<1x8x1xf32, #tpu.memory_space<vmem>>, vector<1x8x1xf32>,
    } else {
    }
    %c0 = arith.constant 0 : index
    %c0_1 = arith.constant 0 : index
    %3 = vector.load %arg2[%c0, %c0_1] : memref<8x32xf32, #tpu.memory_space<vmem>>, vector<8x32xf32>
    %c0_2 = arith.constant 0 : index
    %c0_3 = arith.constant 0 : index
    %4 = vector.load %arg3[%c0_2, %c0_3] : memref<8x1xi32, #tpu.memory_space<vmem>>, vector<8x1xi32>
    %5 = tpu.iota {dimensions = array<i32: 1>} : vector<8x32xi32>
    %6 = vector.broadcast %4 : vector<8x1xi32> to vector<8x32xi32>
    %7 = arith.cmpi eq, %5, %6 : vector<8x32xi32>
    %cst = arith.constant dense<0xFF800000> : vector<8xf32>
    %8 = vector.multi_reduction <maximumf>, %3, %cst [1] : vector<8x32xf32> to vector<8xf32>
    %9 = vector.shape_cast %8 : vector<8xf32> to vector<8x1xf32>
    %10 = vector.broadcast %9 : vector<8x1xf32> to vector<8x32xf32>
    %11 = arith.subf %3, %10 : vector<8x32xf32>
    %12 = math.exp %11 : vector<8x32xf32>
    %cst_4 = arith.constant dense<0.000000e+00> : vector<8xf32>
    %13 = vector.multi_reduction <add>, %12, %cst_4 [1] : vector<8x32xf32> to vector<8xf32>
    %14 = vector.shape_cast %13 : vector<8xf32> to vector<8x1xf32>
    %cst_5 = arith.constant 0.000000e+00 : f32
    %15 = vector.broadcast %cst_5 : f32 to vector<8x32xf32>
    %16 = arith.select %7, %12, %15 : vector<8x32xi1>, vector<8x32xf32>
    %cst_6 = arith.constant dense<0.000000e+00> : vector<8xf32>
    %17 = vector.multi_reduction <add>, %16, %cst_6 [1] : vector<8x32xf32> to vector<8xf32>
    %18 = vector.shape_cast %17 : vector<8xf32> to vector<8x1xf32>
    %19 = math.log %18 : vector<8x1xf32>
    %20 = math.log %14 : vector<8x1xf32>
    %21 = arith.subf %19, %20 : vector<8x1xf32>
    %cst_7 = arith.constant -18.420681 : f32
    %cst_8 = arith.constant 0.000000e+00 : f32
    %22 = vector.broadcast %cst_7 : f32 to vector<8x1xf32>
    %23 = arith.maximumf %22, %21 : vector<8x1xf32>
    %24 = vector.broadcast %cst_8 : f32 to vector<8x1xf32>
    %25 = arith.minimumf %24, %23 : vector<8x1xf32>
    %cst_9 = arith.constant 0.699999988 : f32
    %26 = vector.broadcast %cst_9 : f32 to vector<8x1xf32>
    %27 = arith.mulf %26, %25 : vector<8x1xf32>
    %28 = math.exp %27 : vector<8x1xf32>
    %c1_i32 = arith.constant 1 : i32
    %29 = arith.muli %arg0, %c1_i32 : i32
    %30 = arith.addi %29, %arg1 : i32
    %c8_i32 = arith.constant 8 : i32
    %31 = arith.muli %30, %c8_i32 : i32
    %c8_i32_10 = arith.constant 8 : i32
    %32 = arith.addi %31, %c8_i32_10 : i32
    %c8_i32_11 = arith.constant 8 : i32
    %33 = arith.cmpi sle, %32, %c8_i32_11 : i32
    %34 = arith.extui %33 : i1 to i32
    %c0_i32_12 = arith.constant 0 : i32
    %35 = arith.cmpi ne, %34, %c0_i32_12 : i32
    scf.if %35 {
      %43 = arith.index_cast %arg0 : i32 to index
      %c0_18 = arith.constant 0 : index
      %c0_19 = arith.constant 0 : index
      %44 = vector.load %arg5[%43, %c0_18, %c0_19] : memref<1x8x1xf32, #tpu.memory_space<vmem>>, vector<1x8x1xf32>
      %45 = vector.shape_cast %44 : vector<1x8x1xf32> to vector<8x1xf32>
      %46 = arith.addf %45, %28 : vector<8x1xf32>
      %47 = arith.index_cast %arg0 : i32 to index
      %c0_20 = arith.constant 0 : index
      %c0_21 = arith.constant 0 : index
      %48 = vector.load %arg5[%47, %c0_20, %c0_21] : memref<1x8x1xf32, #tpu.memory_space<vmem>>, vector<1x8x1xf32>
      %49 = vector.shape_cast %48 : vector<1x8x1xf32> to vector<8x1xf32>
      %50 = vector.shape_cast %46 : vector<8x1xf32> to vector<1x8x1xf32>
      tpu.vector_store %arg5[%47, %c0_20, %c0_21], %50 {strides = array<i32>} : memref<1x8x1xf32, #tpu.memory_space<vmem>>, vector<1x8x1xf32>,
    } else {
    }
    %c8_i32_13 = arith.constant 8 : i32
    %36 = arith.addi %31, %c8_i32_13 : i32
    %c8_i32_14 = arith.constant 8 : i32
    %37 = arith.cmpi sgt, %36, %c8_i32_14 : i32
    %38 = arith.extui %37 : i1 to i32
    %c0_i32_15 = arith.constant 0 : i32
    %39 = arith.cmpi ne, %38, %c0_i32_15 : i32
    scf.if %39 {
      %43 = tpu.iota {dimensions = array<i32: 0>} : vector<8x1xi32>
      %44 = vector.broadcast %31 : i32 to vector<8x1xi32>
      %45 = arith.addi %44, %43 : vector<8x1xi32>
      %46 = arith.index_cast %arg0 : i32 to index
      %c0_18 = arith.constant 0 : index
      %c0_19 = arith.constant 0 : index
      %47 = vector.load %arg5[%46, %c0_18, %c0_19] : memref<1x8x1xf32, #tpu.memory_space<vmem>>, vector<1x8x1xf32>
      %48 = vector.shape_cast %47 : vector<1x8x1xf32> to vector<8x1xf32>
      %c8_i32_20 = arith.constant 8 : i32
      %49 = vector.broadcast %c8_i32_20 : i32 to vector<8x1xi32>
      %50 = arith.cmpi slt, %45, %49 : vector<8x1xi32>
      %cst_21 = arith.constant 0.000000e+00 : f32
      %51 = vector.broadcast %cst_21 : f32 to vector<8x1xf32>
      %52 = arith.select %50, %28, %51 : vector<8x1xi1>, vector<8x1xf32>
      %53 = arith.addf %48, %52 : vector<8x1xf32>
      %54 = arith.index_cast %arg0 : i32 to index
      %c0_22 = arith.constant 0 : index
      %c0_23 = arith.constant 0 : index
      %55 = vector.load %arg5[%54, %c0_22, %c0_23] : memref<1x8x1xf32, #tpu.memory_space<vmem>>, vector<1x8x1xf32>
      %56 = vector.shape_cast %55 : vector<1x8x1xf32> to vector<8x1xf32>
      %57 = vector.shape_cast %53 : vector<8x1xf32> to vector<1x8x1xf32>
      tpu.vector_store %arg5[%54, %c0_22, %c0_23], %57 {strides = array<i32>} : memref<1x8x1xf32, #tpu.memory_space<vmem>>, vector<1x8x1xf32>,
    } else {
    }
    %c0_i32_16 = arith.constant 0 : i32
    %40 = arith.cmpi eq, %arg1, %c0_i32_16 : i32
    %41 = arith.extui %40 : i1 to i32
    %c0_i32_17 = arith.constant 0 : i32
    %42 = arith.cmpi ne, %41, %c0_i32_17 : i32
    scf.if %42 {
      %43 = arith.index_cast %arg0 : i32 to index
      %c0_18 = arith.constant 0 : index
      %c0_19 = arith.constant 0 : index
      %44 = vector.load %arg5[%43, %c0_18, %c0_19] : memref<1x8x1xf32, #tpu.memory_space<vmem>>, vector<1x8x1xf32>
      %45 = vector.shape_cast %44 : vector<1x8x1xf32> to vector<8x1xf32>
      %46 = vector.shape_cast %45 : vector<8x1xf32> to vector<1x8x1xf32>
      %cst_20 = arith.constant dense<0.000000e+00> : vector<1xf32>
      %47 = vector.multi_reduction <add>, %46, %cst_20 [1, 2] : vector<1x8x1xf32> to vector<1xf32>
      %48 = vector.shape_cast %47 : vector<1xf32> to vector<1x1x1xf32>
      %49 = vector.extract %48[0, 0, 0] : f32 from vector<1x1x1xf32>
      %c0_21 = arith.constant 0 : index
      %c0_22 = arith.constant 0 : index
      %50 = memref.load %arg4[%c0_21, %c0_22] : memref<1x1xf32, #tpu.memory_space<smem>>
      memref.store %49, %arg4[%c0_21, %c0_22] : memref<1x1xf32, #tpu.memory_space<smem>>
    } else {
    }
    return
  }
  func.func @transform_0(%arg0: i32, %arg1: i32) -> (i32, i32) {
    %c1_i32 = arith.constant 1 : i32
    %0 = arith.muli %arg0, %c1_i32 : i32
    %1 = arith.addi %0, %arg1 : i32
    %c0_i32 = arith.constant 0 : i32
    %2 = arith.minsi %1, %c0_i32 : i32
    %c0_i32_0 = arith.constant 0 : i32
    %c0_i32_1 = arith.constant 0 : i32
    return %2, %c0_i32_0 : i32, i32
  }
  func.func @transform_1(%arg0: i32, %arg1: i32) -> (i32, i32) {
    %c1_i32 = arith.constant 1 : i32
    %0 = arith.muli %arg0, %c1_i32 : i32
    %1 = arith.addi %0, %arg1 : i32
    %c0_i32 = arith.constant 0 : i32
    %2 = arith.minsi %1, %c0_i32 : i32
    %c0_i32_0 = arith.constant 0 : i32
    %c0_i32_1 = arith.constant 0 : i32
    return %2, %c0_i32_0 : i32, i32
  }
  func.func @transform_2(%arg0: i32, %arg1: i32) -> (i32, i32) {
    %c0_i32 = arith.constant 0 : i32
    %c0_i32_0 = arith.constant 0 : i32
    return %arg0, %c0_i32 : i32, i32
  }
}

</mosaic_0001>

<llo_original>
// kernel: tpu_custom_call.1
$region0: #{tpu_custom_call.1}
  #allocation0 [shape = 'u32[]', space=smem, size = 0x4, offset = 0x4, fixed_abs, tag = 'smem constant byte address 0x4 - core index']
  #allocation1 [shape = 'u32[144,128]{1,0:T(1,128)}', space=vmem, size = 0x12000, scoped, tag = 'internal scratch']
  #allocation2 [shape = 'f32[1,8,1]{2,1,0:T(8,128)}', space=vmem, size = 0x1000, scoped, tag = 'scratch operand']
  %s0 = inlined_call_operand.vmem [shape: f32[8,32], index: 0, kind: input, shape index: {}]
  %s1 = inlined_call_operand.vmem [shape: s32[8,1], index: 1, kind: input, shape index: {}]
  %s2 = inlined_call_operand.hbm [shape: f32[1,1], index: 2, kind: output, shape index: {}]
  %s3 = sld [smem:[#allocation0]]
  $region34: #{tpu_custom_call.1} parent=0
    _
  %s5 = ssub.s32 1, %s3
  %s6 = scalar_select 0, %s5, %s3
  $region1: #{tpu_custom_call.1} parent=0
    #allocation3 [shape = 'u8[512]{0}', space=smem, size = 0x200, scoped, tag = 'output window, operand 0, single buffered']
    #allocation4 [shape = 's32[1]{0}', space=sflag, size = 0x4, scoped, tag = 'scoped memory for tpu_custom_call.1']
    %7 = vsyncpa [#allocation4], 0
    // Predicated region
    $region2: #{tpu_custom_call.1} parent=1 // pred_check
      _
    $region3: #{tpu_custom_call.1} parent=1 // pred_check_branch
      %9 = sbr.rel (0) target = $region5
    $region4: #{tpu_custom_call.1} parent=1 // pred_region
      %s10 = sadd.s32 0, 0
      %p11 = scmp.lt.s32.totalorder %s10, 0
      %s12 = scalar_select %p11, %s10, 0
      %p13 = scmp.lt.s32.totalorder %s12, 0
      %s14 = scalar_select %p13, %s12, 0
      %s15 = smul.addr %s14, 8
      %s16 = scalar_lea.vmem %s0, %s15
      %s17 = sadd.s32 0, 0
      %p18 = scmp.lt.s32.totalorder %s17, 0
      %s19 = scalar_select %p18, %s17, 0
    $region5: #{tpu_custom_call.1} parent=1 // pred_fallthru
      _
    // Predicated region
    $region6: #{tpu_custom_call.1} parent=1 // pred_check
      _
    $region7: #{tpu_custom_call.1} parent=1 // pred_check_branch
      %21 = sbr.rel (0) target = $region9
    $region8: #{tpu_custom_call.1} parent=1 // pred_region
      %s22 = sadd.s32 0, 0
      %p23 = scmp.lt.s32.totalorder %s22, 0
      %s24 = scalar_select %p23, %s22, 0
      %p25 = scmp.lt.s32.totalorder %s24, 0
      %s26 = scalar_select %p25, %s24, 0
      %s27 = smul.addr %s26, 8
      %s28 = scalar_lea.vmem %s1, %s27
      %s29 = sadd.s32 0, 0
      %p30 = scmp.lt.s32.totalorder %s29, 0
      %s31 = scalar_select %p30, %s29, 0
    $region9: #{tpu_custom_call.1} parent=1 // pred_fallthru
      _
    %s32 = sadd.s32 0, 0
    %p33 = scmp.lt.s32.totalorder %s32, 0
    %s34 = scalar_select %p33, %s32, 0
    %p35 = scmp.lt.s32.totalorder %s34, 0
    %s36 = scalar_select %p35, %s34, 0
    %s37 = smul.addr %s36, 8
    %s38 = scalar_lea.vmem %s0, %s37
    %s39 = sadd.s32 0, 0
    %p40 = scmp.lt.s32.totalorder %s39, 0
    %s41 = scalar_select %p40, %s39, 0
    %p42 = scmp.lt.s32.totalorder %s41, 0
    %s43 = scalar_select %p42, %s41, 0
    %s44 = smul.addr %s43, 8
    %s45 = scalar_lea.vmem %s1, %s44
    %s46 = sadd.s32 0, 0
    %p47 = scmp.lt.s32.totalorder %s46, 0
    %s48 = scalar_select %p47, %s46, 0
    %p49 = scmp.lt.s32.totalorder %s48, 0
    %s50 = scalar_select %p49, %s48, 0
    %s51 = smul.addr %s50, 8
    %s52 = scalar_lea.vmem %s0, %s51
    %s53 = sadd.s32 0, 0
    %p54 = scmp.lt.s32.totalorder %s53, 0
    %s55 = scalar_select %p54, %s53, 0
    %s56 = sadd.s32 0, 0
    %p57 = scmp.lt.s32.totalorder %s56, 0
    %s58 = scalar_select %p57, %s56, 0
    %p59 = scmp.lt.s32.totalorder %s58, 0
    %s60 = scalar_select %p59, %s58, 0
    %s61 = smul.addr %s60, 8
    %s62 = scalar_lea.vmem %s1, %s61
    %s63 = sadd.s32 0, 0
    %p64 = scmp.lt.s32.totalorder %s63, 0
    %s65 = scalar_select %p64, %s63, 0
    %p66 = scmp.eq.s32.totalorder 0, 0
    // Predicated region
    $region10: #{tpu_custom_call.1} parent=1 // pred_check
      %p67 = pneg %p66
    $region11: #{tpu_custom_call.1} parent=1 // pred_check_branch
      %69 = sbr.rel (%p67) target = $region13
    $region12: #{tpu_custom_call.1} parent=1 // pred_region
      %s70 = smul.u32 0, 8
      %s71 = scalar_lea.vmem [#allocation2], %s70
      %vm72 = vcmask 7168
      %73 = vst.msk [vmem:[%s71] sm:$0xff] %vm72, 0.0
    $region13: #{tpu_custom_call.1} parent=1 // pred_fallthru
      _
    %v74 = vld [vmem:[%s52] sm:$0xff]
    %v75 = vld [vmem:[%s62] sm:$0xff]
    %v76 = vlaneseq
    %v77 = vand.u32 %v76, 127
    %78 = vset.pattern.permute.xlu0 0
    %79 = vperm.xlu0 %78, %v75
    %v80 = vpop.permute.xlu0 %79
    %vm81 = vcmp.eq.s32.totalorder %v77, %v80
    %vm82 = vcmask 261120
    %v83 = vsel %vm82, %v74, -inf
    %84 = vmax.xlane.f32.xlu0 %v83
    %v85 = vpop.xlane.xlu0 %84
    %v86 = vsub.f32 %v74, %v85
    %v87 = vmul.f32 %v86, 1.442695
    %v88 = vpow.pop %v87
    %v89 = vsel %vm82, %v88, 0.0
    %90 = vadd.xlane.f32.xlu0 %v89
    %v91 = vpop.xlane.xlu0 %90
    %v92 = vsel %vm81, %v88, 0.0
    %v93 = vsel %vm82, %v92, 0.0
    %94 = vadd.xlane.f32.xlu0 %v93
    %v95 = vpop.xlane.xlu0 %94
    %v96 = vlog2.pop %v95
    %v97 = vmul.f32 %v96, 0.6931472
    %v98 = vlog2.pop %v91
    %v99 = vmul.f32 %v98, 0.6931472
    %v100 = vsub.f32 %v97, %v99
    %v101 = vmax.f32 %v100, -18.420681
    %v102 = vmin.f32 %v101, 0.0
    %v103 = vmul.f32 %v102, 0.7
    %v104 = vmul.f32 %v103, 1.442695
    %v105 = vpow.pop %v104
    %s106 = sadd.s32 0, 0
    %s107 = smul.u32 %s106, 8
    %s108 = sadd.s32 %s107, 8
    %p109 = scmp.le.s32.totalorder %s108, 8
    // Predicated region
    $region14: #{tpu_custom_call.1} parent=1 // pred_check
      %p110 = pneg %p109
    $region15: #{tpu_custom_call.1} parent=1 // pred_check_branch
      %112 = sbr.rel (%p110) target = $region17
    $region16: #{tpu_custom_call.1} parent=1 // pred_region
      %s113 = smul.u32 0, 8
      %s114 = scalar_lea.vmem [#allocation2], %s113
      %v115 = vld [vmem:[%s114] sm:$0xff]
      %v116 = vadd.f32 %v115, %v105
      %vm117 = vcmask 7168
      %118 = vst.msk [vmem:[%s114] sm:$0xff] %vm117, %v116
    $region17: #{tpu_custom_call.1} parent=1 // pred_fallthru
      _
    %p119 = scmp.gt.s32.totalorder %s108, 8
    // Predicated region
    $region18: #{tpu_custom_call.1} parent=1 // pred_check
      %p120 = pneg %p119
    $region19: #{tpu_custom_call.1} parent=1 // pred_check_branch
      %122 = sbr.rel (%p120) target = $region21
    $region20: #{tpu_custom_call.1} parent=1 // pred_region
      %v123 = vlaneseq
      %v124 = vshrl.u32 %v123, 7
      %v125 = vstv %s107
      %v126 = vadd.s32 %v125, %v124
      %s127 = smul.u32 0, 8
      %s128 = scalar_lea.vmem [#allocation2], %s127
      %v129 = vld [vmem:[%s128] sm:$0xff]
      %vm130 = vcmp.lt.s32.totalorder %v126, 8
      %v131 = vsel %vm130, %v105, 0.0
      %v132 = vadd.f32 %v129, %v131
      %vm133 = vcmask 7168
      %134 = vst.msk [vmem:[%s128] sm:$0xff] %vm133, %v132
    $region21: #{tpu_custom_call.1} parent=1 // pred_fallthru
      _
    // Predicated region
    $region22: #{tpu_custom_call.1} parent=1 // pred_check
      %p135 = pneg %p66
    $region23: #{tpu_custom_call.1} parent=1 // pred_check_branch
      %137 = sbr.rel (%p135) target = $region25
    $region24: #{tpu_custom_call.1} parent=1 // pred_region
      %s138 = smul.u32 0, 8
      %s139 = scalar_lea.vmem [#allocation2], %s138
      %v140 = vld [vmem:[%s139] sm:$0xff]
      %vm141 = vcmask 7168
      %v142 = vsel %vm141, %v140, 0.0
      %143 = vadd.xlane.f32.xlu0 %v142
      %v144 = vpop.xlane.xlu0 %143
      %v145 = vrot.slane %v144, 4
      %v146 = vadd.f32 %v144, %v145
      %v147 = vrot.slane %v146, 2
      %v148 = vadd.f32 %v146, %v147
      %v149 = vrot.slane %v148, 1
      %v150 = vadd.f32 %v148, %v149
      %s151 = vtos %v150
      %s152 = scalar_lea.smem [#allocation3], 0
      %153 = sst [smem:[%s152]] %s151
    $region25: #{tpu_custom_call.1} parent=1 // pred_fallthru
      _
    // Predicated region
    $region26: #{tpu_custom_call.1} parent=1 // pred_check
      _
    $region27: #{tpu_custom_call.1} parent=1 // pred_check_branch
      %155 = sbr.rel (0) target = $region29
    $region28: #{tpu_custom_call.1} parent=1 // pred_region
      %s157 = ssub.s32 16, 16
      %158 = vsyncadd [#allocation4], %s157
      %161 = dma.smem_to_hbm [#allocation3], 16, %s2, [#allocation4]
    $region29: #{tpu_custom_call.1} parent=1 // pred_fallthru
      _
    // Predicated region
    $region30: #{tpu_custom_call.1} parent=1 // pred_check
      _
    $region31: #{tpu_custom_call.1} parent=1 // pred_check_branch
      %163 = sbr.rel (0) target = $region33
    $region32: #{tpu_custom_call.1} parent=1 // pred_region
      %164 = dma.done [#allocation4], 16
    $region33: #{tpu_custom_call.1} parent=1 // pred_fallthru
      _
    %165 = sfence
    %166 = vsyncpa [#allocation4], 1

</llo_original>
